<compile_context>
chip_gen: v6e
topology: v6e:2x2x1
jax: 0.10.0
libtpu: 0.0.40
codegen_flags: <defaults>
</compile_context>

<pallas_src>
import jax
import jax.numpy as jnp
from jax.experimental import pallas as pl
from jax.experimental.pallas import tpu as pltpu

_LANE = 128
_SUBLANE = 8
# 16384 rows x 128 lanes x 4 B = 8 MiB per output tile; 16 MiB double-buffered.
# Fits the explicit 32 MiB scoped-VMEM limit below on every generation
# (v5e/v6e: 128 MiB physical VMEM; v7x: 64 MiB physical).
_TILE_ROWS = 16384
_VMEM_LIMIT_BYTES = 32 * 1024 * 1024


def _sharpness_kernel(value_ref, out_ref):
    # value_ref: SMEM scalar (shape (1,)); out_ref: VMEM (tile_rows, 128) f32.
    s = jnp.exp(10.0 * value_ref[0])                    # single EUP op per step
    out_ref[...] = jnp.full(out_ref.shape, s, dtype=out_ref.dtype)


def sharpness_forward(points: jax.Array, value: jax.Array) -> jax.Array:
    """Pallas equivalent of SharpnessNetwork.forward: exp(10*value) -> [*batch]."""
    batch_shape = points.shape[:-1]
    n = 1
    for d in batch_shape:
        n *= int(d)

    value_f32 = jnp.reshape(value, (1,)).astype(jnp.float32)

    if n == 0:
        # Empty batch: nothing to materialize; keep semantics (and dtype) exact.
        return jnp.broadcast_to(jnp.exp(10.0 * value_f32[0]), batch_shape)

    # Lane-dense layout: rows of 128 lanes, rounded up to a sublane multiple.
    rows_needed = -(-n // _LANE)
    rows_needed = ((rows_needed + _SUBLANE - 1) // _SUBLANE) * _SUBLANE
    tile_rows = min(_TILE_ROWS, rows_needed)            # multiple of 8 either way
    grid = -(-rows_needed // tile_rows)                 # ragged last block is clipped
    padded_n = rows_needed * _LANE                      # padding < 1024 elements

    out_2d = pl.pallas_call(
        _sharpness_kernel,
        out_shape=jax.ShapeDtypeStruct((rows_needed, _LANE), jnp.float32),
        grid=(grid,),
        in_specs=[pl.BlockSpec(memory_space=pltpu.MemorySpace.SMEM)],
        out_specs=pl.BlockSpec((tile_rows, _LANE), lambda i: (i, 0)),
        compiler_params=pltpu.CompilerParams(
            dimension_semantics=("parallel",),
            vmem_limit_bytes=_VMEM_LIMIT_BYTES,
        ),
        cost_estimate=pl.CostEstimate(
            flops=grid,
            transcendentals=grid,
            bytes_accessed=4 * padded_n,
        ),
    )(value_f32)

    if padded_n == n:
        # Aligned case: pure reshape (free bitcast), no extra HBM pass.
        return out_2d.reshape(batch_shape)
    # Unaligned case: unavoidable slice-copy of exactly n elements (<1024 pad).
    return out_2d.reshape(-1)[:n].reshape(batch_shape)


if __name__ == "__main__":
    key = jax.random.PRNGKey(0)

    # Deterministic parameter init (module's __init__ takes initial_value).
    initial_value = 0.3
    value = jnp.asarray(initial_value, dtype=jnp.float32)
    expected_scalar = jnp.exp(10.0 * value)

    # Small example input consistent with the module: (*batch, 3)
    points = jax.random.normal(key, (2, 16, 3), dtype=jnp.float32)
    out = jax.block_until_ready(sharpness_forward(points, value))
    assert out.shape == points.shape[:-1], (out.shape, points.shape[:-1])
    assert out.dtype == jnp.float32
    assert bool(jnp.allclose(out, expected_scalar, rtol=1e-6, atol=1e-6))

    # Unaligned batch (exercises the <1024-element padding + slice path).
    points_unaligned = jnp.ones((7, 13, 3), dtype=jnp.float32)
    out_u = jax.block_until_ready(sharpness_forward(points_unaligned, value))
    assert out_u.shape == (7, 13)
    assert bool(jnp.allclose(out_u, expected_scalar, rtol=1e-6, atol=1e-6))

    # Aligned batch spanning one full tile exactly (padded_n == n -> free reshape).
    points_aligned = jnp.zeros((1024, 1024, 3), dtype=jnp.float32)
    out_a = jax.block_until_ready(sharpness_forward(points_aligned, value))
    assert out_a.shape == (1024, 1024)
    assert bool(jnp.allclose(out_a, expected_scalar, rtol=1e-6, atol=1e-6))

    # Multi-tile grid with a ragged (clipped) last block.
    points_big = jnp.zeros((2500, 1000, 3), dtype=jnp.float32)
    out_b = jax.block_until_ready(sharpness_forward(points_big, value))
    assert out_b.shape == (2500, 1000)
    assert bool(jnp.allclose(out_b, expected_scalar, rtol=1e-6, atol=1e-6))

    # Zero-sized batch dim (handled without launching the kernel).
    points_empty = jnp.zeros((0, 5, 3), dtype=jnp.float32)
    out_e = jax.block_until_ready(sharpness_forward(points_empty, value))
    assert out_e.shape == (0, 5)

    print("KERNEL_OK")
</pallas_src>

<mosaic_0001>
module attributes {stable_mosaic.version = 11 : i64} {
  func.func @_sharpness_kernel(%arg0: i32, %arg1: memref<1xf32, #tpu.memory_space<smem>>, %arg2: memref<8x128xf32, #tpu.memory_space<vmem>>) attributes {dimension_semantics = [#tpu.dimension_semantics<parallel>], iteration_bounds = array<i64: 1>, scalar_prefetch = 0 : i64, scratch_operands = 0 : i64, tpu.core_type = #tpu.core_type<tc>, window_params = [{transform_indices = @transform_0, window_bounds = array<i64: 1>}, {transform_indices = @transform_1, window_bounds = array<i64: 8, 128>}]} {
    %c0 = arith.constant 0 : index
    %0 = memref.load %arg1[%c0] : memref<1xf32, #tpu.memory_space<smem>>
    %cst = arith.constant 1.000000e+01 : f32
    %1 = arith.mulf %cst, %0 : f32
    %2 = math.exp %1 : f32
    %3 = vector.broadcast %2 : f32 to vector<8x128xf32>
    %c0_0 = arith.constant 0 : index
    %c0_1 = arith.constant 0 : index
    %4 = vector.load %arg2[%c0_0, %c0_1] : memref<8x128xf32, #tpu.memory_space<vmem>>, vector<8x128xf32>
    tpu.vector_store %arg2[%c0_0, %c0_1], %3 {strides = array<i32>} : memref<8x128xf32, #tpu.memory_space<vmem>>, vector<8x128xf32>,
    return
  }
  func.func @transform_0(%arg0: i32) -> i32 {
    %c0_i32 = arith.constant 0 : i32
    %c0_i32_0 = arith.constant 0 : i32
    return %c0_i32 : i32
  }
  func.func @transform_1(%arg0: i32) -> (i32, i32) {
    %c0_i32 = arith.constant 0 : i32
    %c0_i32_0 = arith.constant 0 : i32
    return %arg0, %c0_i32 : i32, i32
  }
}

</mosaic_0001>

<llo_original>
// kernel: tpu_custom_call.1
$region0: #{tpu_custom_call.1}
  #allocation0 [shape = 'u32[]', space=smem, size = 0x4, offset = 0x4, fixed_abs, tag = 'smem constant byte address 0x4 - core index']
  #allocation1 [shape = 'u32[144,128]{1,0:T(1,128)}', space=vmem, size = 0x12000, scoped, tag = 'internal scratch']
  #allocation2 [shape = 'f32[1]{0:T(128)S(6)}', space=smem, size = 0x200, scoped, tag = 'scoped memory for tpu_custom_call.1']
  %s0 = inlined_call_operand.<no memory space> [shape: f32[1], index: 0, kind: input, shape index: {}]
  %s1 = inlined_call_operand.hbm [shape: f32[8,128], index: 1, kind: output, shape index: {}]
  %s2 = sld [smem:[#allocation0]]
  $region14: #{tpu_custom_call.1} parent=0
    _
  %s4 = ssub.s32 1, %s2
  %s5 = scalar_select 0, %s4, %s2
  %6 = sst [smem:[#allocation2]] %s0
  $region1: #{tpu_custom_call.1} parent=0
    #allocation3 [shape = 'u8[4096]{0}', space=vmem, size = 0x1000, scoped, tag = 'output window, operand 0, single buffered']
    #allocation4 [shape = 's32[1]{0}', space=sflag, size = 0x4, scoped, tag = 'scoped memory for tpu_custom_call.1']
    %7 = vsyncpa [#allocation4], 0
    // Predicated region
    $region2: #{tpu_custom_call.1} parent=1 // pred_check
      _
    $region3: #{tpu_custom_call.1} parent=1 // pred_check_branch
      %9 = sbr.rel (0) target = $region5
    $region4: #{tpu_custom_call.1} parent=1 // pred_region
      _
    $region5: #{tpu_custom_call.1} parent=1 // pred_fallthru
      _
    %s10 = sld [smem:[#allocation2]]
    %s11 = smul.f32 %s10, 10.0
    %v12 = vstv %s11
    %v13 = vmul.f32 %v12, 1.442695
    %v14 = vpow.pop %v13
    %s15 = vtos %v14
    %v16 = vstv %s15
    %17 = vst [vmem:[#allocation3] sm:$0xff] %v16
    // Predicated region
    $region6: #{tpu_custom_call.1} parent=1 // pred_check
      _
    $region7: #{tpu_custom_call.1} parent=1 // pred_check_branch
      %19 = sbr.rel (0) target = $region9
    $region8: #{tpu_custom_call.1} parent=1 // pred_region
      %s21 = ssub.s32 128, 128
      %22 = vsyncadd [#allocation4], %s21
      %s24 = sshll.u32 [#allocation3], 4
      %s25 = int_to_ptr.vmem [resolvable:$true] %s24
      %27 = dma.vmem_to_hbm [thread:$0]  %s25, 128, %s1, [#allocation4]
    $region9: #{tpu_custom_call.1} parent=1 // pred_fallthru
      _
    // Predicated region
    $region10: #{tpu_custom_call.1} parent=1 // pred_check
      _
    $region11: #{tpu_custom_call.1} parent=1 // pred_check_branch
      %29 = sbr.rel (0) target = $region13
    $region12: #{tpu_custom_call.1} parent=1 // pred_region
      %30 = dma.done [#allocation4], 128
    $region13: #{tpu_custom_call.1} parent=1 // pred_fallthru
      _
    %31 = vsyncpa [#allocation4], 1

</llo_original>
